<compile_context>
chip_gen: v6e
topology: v6e:2x2x1
jax: 0.10.0
libtpu: 0.0.40
codegen_flags: <defaults>
</compile_context>

<pallas_src>
import functools

import jax
import jax.numpy as jnp
from jax import lax
from jax.experimental import pallas as pl
from jax.experimental.pallas import tpu as pltpu

LANES = 128                          # vreg lane width
TR = 2048                            # rows per tiled block: 2048*128*4B = 1 MiB
FUSED_MAX_ELEMS = 1 << 20            # <= 4 MiB of f32 -> fused single-pass path
_VMEM_LIMIT_FUSED = 40 * 1024 * 1024   # safe on v5e/v6e (128 MiB) and v7x (64 MiB)
_VMEM_LIMIT_TILED = 32 * 1024 * 1024   # tiled path needs only a few MiB


# ---------------------------------------------------------------------------
# shared math (exact replica of the PyTorch forward, in f32)
# ---------------------------------------------------------------------------
def _quant_math(x_f32, w_min, w_max, bits):
    s = (w_max - w_min) / jnp.float32(2 ** bits - 1)
    q = jnp.round((x_f32 - w_min) / (s + jnp.float32(1e-10)))
    return q * s + w_min


# ---------------------------------------------------------------------------
# fused single-pass kernel (whole tensor resident in VMEM, 1R + 1W of HBM)
# ---------------------------------------------------------------------------
def _fused_kernel(x_ref, o_ref, *, bits):
    x = x_ref[...].astype(jnp.float32)
    w_min = jnp.min(x)
    w_max = jnp.max(x)
    o_ref[...] = _quant_math(x, w_min, w_max, bits).astype(o_ref.dtype)


# ---------------------------------------------------------------------------
# tiled pass 1: per-block partial min / max
#   Each grid step folds its (TR, 128) tile down to an (8, 128) partial via
#   pure VALU elementwise min/max (vreg-tile aligned reshape, no XLU) and
#   writes it to its own distinct output block -> no cross-step scratch state,
#   no conditional last-step writes, trivially "parallel" for megacore.
#   The ragged last row-block is neutralized with +inf / -inf via a row mask.
# ---------------------------------------------------------------------------
def _minmax_kernel(x_ref, pmin_ref, pmax_ref, *, rows, block_rows):
    tile = x_ref[...].astype(jnp.float32)                      # (TR, 128)
    if rows % block_rows != 0:                                 # static check
        i = pl.program_id(0)
        row = lax.broadcasted_iota(jnp.int32, tile.shape, 0) + i * block_rows
        valid = row < rows
        tmin = jnp.where(valid, tile, jnp.float32(jnp.inf))
        tmax = jnp.where(valid, tile, jnp.float32(-jnp.inf))
    else:
        tmin = tile
        tmax = tile
    groups = block_rows // 8
    pmin_ref[...] = jnp.min(tmin.reshape(groups, 8, LANES), axis=0)
    pmax_ref[...] = jnp.max(tmax.reshape(groups, 8, LANES), axis=0)


# ---------------------------------------------------------------------------
# tiled pass 2: elementwise fake quantization (scalars ride the SMEM path).
#   The ragged last block computes on undefined rows but Pallas clips the
#   writeback to the in-bounds region, so no junk reaches the output.
# ---------------------------------------------------------------------------
def _quant_kernel(scal_ref, x_ref, o_ref, *, bits):
    w_min = scal_ref[0]
    w_max = scal_ref[1]
    x = x_ref[...].astype(jnp.float32)
    o_ref[...] = _quant_math(x, w_min, w_max, bits).astype(o_ref.dtype)


# ---------------------------------------------------------------------------
# wrapper
# ---------------------------------------------------------------------------
def quantize(w: jax.Array, bits: int, *, fused_max_elems: int = FUSED_MAX_ELEMS):
    """Pallas equivalent of Quantize(bits).forward(w)."""
    orig_shape = w.shape
    orig_dtype = w.dtype
    total = int(w.size)
    if total == 0:                       # empty input guard
        return w

    flat = w.reshape(-1)
    padded_total = ((total + LANES - 1) // LANES) * LANES
    needs_pad = padded_total != total
    if needs_pad:
        # Rare fallback (total not a multiple of 128): pad with flat[0], which
        # is min/max-neutral.  Costs one copy; the common case is copy-free.
        pad = jnp.broadcast_to(flat[:1], (padded_total - total,))
        flat = jnp.concatenate([flat, pad])
    rows = padded_total // LANES
    x2 = flat.reshape(rows, LANES)       # lane-dense slab, original dtype

    if total <= fused_max_elems:
        # ---- fused single-pass path: whole tensor resident in VMEM ---------
        out2 = pl.pallas_call(
            functools.partial(_fused_kernel, bits=bits),
            out_shape=jax.ShapeDtypeStruct((rows, LANES), orig_dtype),
            in_specs=[pl.BlockSpec(memory_space=pltpu.MemorySpace.VMEM)],
            out_specs=pl.BlockSpec(memory_space=pltpu.MemorySpace.VMEM),
            compiler_params=pltpu.CompilerParams(
                vmem_limit_bytes=_VMEM_LIMIT_FUSED),
        )(x2)
    else:
        # ---- tiled two-pass streaming path ----------------------------------
        nblk = (rows + TR - 1) // TR

        # pass 1: per-block (8,128) partial min / max
        pmin, pmax = pl.pallas_call(
            functools.partial(_minmax_kernel, rows=rows, block_rows=TR),
            out_shape=(
                jax.ShapeDtypeStruct((nblk * 8, LANES), jnp.float32),
                jax.ShapeDtypeStruct((nblk * 8, LANES), jnp.float32),
            ),
            grid=(nblk,),
            in_specs=[pl.BlockSpec((TR, LANES), lambda i: (i, 0))],
            out_specs=(
                pl.BlockSpec((8, LANES), lambda i: (i, 0)),
                pl.BlockSpec((8, LANES), lambda i: (i, 0)),
            ),
            compiler_params=pltpu.CompilerParams(
                dimension_semantics=("parallel",),     # no cross-step state
                vmem_limit_bytes=_VMEM_LIMIT_TILED),
        )(x2)

        # tiny finishing reduce (nblk*4 KiB) -> exact global min / max scalars
        w_min = jnp.min(pmin)
        w_max = jnp.max(pmax)
        scal = jnp.stack([w_min, w_max]).astype(jnp.float32)   # (2,) f32

        # pass 2: elementwise quantize; scalars delivered through SMEM
        out2 = pl.pallas_call(
            functools.partial(_quant_kernel, bits=bits),
            out_shape=jax.ShapeDtypeStruct((rows, LANES), orig_dtype),
            grid=(nblk,),
            in_specs=[
                pl.BlockSpec(memory_space=pltpu.MemorySpace.SMEM),  # scalars
                pl.BlockSpec((TR, LANES), lambda i: (i, 0)),        # data
            ],
            out_specs=pl.BlockSpec((TR, LANES), lambda i: (i, 0)),
            compiler_params=pltpu.CompilerParams(
                dimension_semantics=("parallel",),     # v7x: both TCs
                vmem_limit_bytes=_VMEM_LIMIT_TILED),
        )(scal, x2)

    out_flat = out2.reshape(-1)
    if needs_pad:
        out_flat = out_flat[:total]
    return out_flat.reshape(orig_shape)


# ---------------------------------------------------------------------------
# reference + verification
# ---------------------------------------------------------------------------
def _quantize_ref(w, bits):
    """Pure-JAX reference matching the PyTorch forward exactly."""
    w_min = jnp.min(w)
    w_max = jnp.max(w)
    s = (w_max - w_min) / (2 ** bits - 1)
    return jnp.round((w - w_min) / (s + 1e-10)) * s + w_min


def _check(out, ref, bits, name):
    """Every element must match, or differ by exactly one quantization level.

    A one-level difference can only happen at round-to-nearest tie points,
    where the hardware divide's last-ulp behaviour may legitimately differ
    between the Mosaic kernel and the XLA reference (same is true between
    PyTorch devices).  Anything else (wrong min/max, wrong scale, structural
    bugs) produces errors that are neither ~0 nor ~one step and fails here.
    """
    ref32 = ref.astype(jnp.float32)
    out32 = out.astype(jnp.float32)
    step = (jnp.max(ref32) - jnp.min(ref32)) / (2 ** bits - 1)
    err = jnp.abs(out32 - ref32)
    tol = 1e-4
    ok = (err <= tol) | (jnp.abs(err - step) <= tol)
    assert bool(jnp.all(ok)), f"{name}: max abs err {float(jnp.max(err))}"
    n_mismatch = int(jnp.sum((err > tol).astype(jnp.int32)))
    cap = max(5, out32.size // 2000)
    assert n_mismatch <= cap, f"{name}: {n_mismatch} tie mismatches (> {cap})"


if __name__ == "__main__":
    bits = 4
    k1, k2, k3 = jax.random.split(jax.random.PRNGKey(0), 3)

    # 1) Small conv-weight-like NCHW tensor -> fused single-pass path.
    x_small = jax.random.normal(k1, (2, 4, 16, 16), dtype=jnp.float32)
    out_small = jax.block_until_ready(quantize(x_small, bits))
    assert out_small.shape == x_small.shape and out_small.dtype == x_small.dtype
    _check(out_small, _quantize_ref(x_small, bits), bits, "fused")

    # 2) Larger tensor forced through the tiled two-pass path; its 4112 rows
    #    are not a multiple of TR, exercising the ragged-block masking.
    x_big = jax.random.normal(k2, (2, 4, 256, 257), dtype=jnp.float32)
    out_big = jax.block_until_ready(quantize(x_big, bits, fused_max_elems=0))
    assert out_big.shape == x_big.shape and out_big.dtype == x_big.dtype
    _check(out_big, _quantize_ref(x_big, bits), bits, "tiled")

    # 3) Total not divisible by 128 -> exercises the lane-pad fallback.
    x_odd = jax.random.normal(k3, (3, 5, 7), dtype=jnp.float32)
    out_odd = jax.block_until_ready(quantize(x_odd, bits))
    assert out_odd.shape == x_odd.shape and out_odd.dtype == x_odd.dtype
    _check(out_odd, _quantize_ref(x_odd, bits), bits, "odd")

    print("KERNEL_OK")
</pallas_src>

<mosaic_0001>
module attributes {stable_mosaic.version = 11 : i64} {
  func.func @_fused_kernel(%arg0: memref<16x128xf32, #tpu.memory_space<vmem>>, %arg1: memref<16x128xf32, #tpu.memory_space<vmem>>) attributes {dimension_semantics = [], scalar_prefetch = 0 : i64, scratch_operands = 0 : i64, tpu.core_type = #tpu.core_type<tc>} {
    %c0 = arith.constant 0 : index
    %c0_0 = arith.constant 0 : index
    %0 = vector.load %arg0[%c0, %c0_0] : memref<16x128xf32, #tpu.memory_space<vmem>>, vector<16x128xf32>
    %1 = vector.shape_cast %0 : vector<16x128xf32> to vector<1x16x128xf32>
    %cst = arith.constant dense<0x7F800000> : vector<1xf32>
    %2 = vector.multi_reduction <minimumf>, %1, %cst [1, 2] : vector<1x16x128xf32> to vector<1xf32>
    %3 = vector.shape_cast %2 : vector<1xf32> to vector<1x1x1xf32>
    %4 = vector.extract %3[0, 0, 0] : f32 from vector<1x1x1xf32>
    %5 = vector.shape_cast %0 : vector<16x128xf32> to vector<1x16x128xf32>
    %cst_1 = arith.constant dense<0xFF800000> : vector<1xf32>
    %6 = vector.multi_reduction <maximumf>, %5, %cst_1 [1, 2] : vector<1x16x128xf32> to vector<1xf32>
    %7 = vector.shape_cast %6 : vector<1xf32> to vector<1x1x1xf32>
    %8 = vector.extract %7[0, 0, 0] : f32 from vector<1x1x1xf32>
    %9 = arith.subf %8, %4 : f32
    %cst_2 = arith.constant 1.500000e+01 : f32
    %10 = arith.divf %9, %cst_2 : f32
    %11 = vector.broadcast %4 : f32 to vector<16x128xf32>
    %12 = arith.subf %0, %11 : vector<16x128xf32>
    %cst_3 = arith.constant 1.000000e-10 : f32
    %13 = arith.addf %10, %cst_3 : f32
    %14 = vector.broadcast %13 : f32 to vector<16x128xf32>
    %15 = arith.divf %12, %14 : vector<16x128xf32>
    %16 = math.roundeven %15 : vector<16x128xf32>
    %17 = vector.broadcast %10 : f32 to vector<16x128xf32>
    %18 = arith.mulf %16, %17 : vector<16x128xf32>
    %19 = vector.broadcast %4 : f32 to vector<16x128xf32>
    %20 = arith.addf %18, %19 : vector<16x128xf32>
    %c0_4 = arith.constant 0 : index
    %c0_5 = arith.constant 0 : index
    %21 = vector.load %arg1[%c0_4, %c0_5] : memref<16x128xf32, #tpu.memory_space<vmem>>, vector<16x128xf32>
    tpu.vector_store %arg1[%c0_4, %c0_5], %20 {strides = array<i32>} : memref<16x128xf32, #tpu.memory_space<vmem>>, vector<16x128xf32>,
    return
  }
}

</mosaic_0001>

<llo_original>
// kernel: tpu_custom_call.1
$region0: #{tpu_custom_call.1}
  #allocation0 [shape = 'u32[]', space=smem, size = 0x4, offset = 0x4, fixed_abs, tag = 'smem constant byte address 0x4 - core index']
  #allocation1 [shape = 'u32[144,128]{1,0:T(1,128)}', space=vmem, size = 0x12000, scoped, tag = 'internal scratch']
  %s0 = inlined_call_operand.hbm [shape: f32[16,128], index: 0, kind: input, shape index: {}]
  %s1 = inlined_call_operand.hbm [shape: f32[16,128], index: 1, kind: output, shape index: {}]
  %s2 = sld [smem:[#allocation0]]
  $region18: #{tpu_custom_call.1} parent=0
    _
  %s4 = ssub.s32 1, %s2
  %s5 = scalar_select 0, %s4, %s2
  $region1: #{tpu_custom_call.1} parent=0
    #allocation2 [shape = 'u8[8192]{0}', space=vmem, size = 0x2000, scoped, tag = 'input window, operand 0, single buffered']
    #allocation3 [shape = 's32[1]{0}', space=sflag, size = 0x4, scoped, tag = 'scoped memory for tpu_custom_call.1']
    #allocation4 [shape = 's32[1]{0}', space=sflag, size = 0x4, scoped, tag = 'scoped memory for tpu_custom_call.1']
    #allocation5 [shape = 'u8[8192]{0}', space=vmem, size = 0x2000, scoped, tag = 'output window, operand 0, single buffered']
    %6 = vsyncpa [#allocation3], 0
    %7 = vsyncpa [#allocation4], 0
    // Predicated region
    $region2: #{tpu_custom_call.1} parent=1 // pred_check
      _
    $region3: #{tpu_custom_call.1} parent=1 // pred_check_branch
      %9 = sbr.rel (0) target = $region5
    $region4: #{tpu_custom_call.1} parent=1 // pred_region
      %s11 = ssub.s32 256, 256
      %12 = vsyncadd [#allocation3], %s11
      %s13 = sshll.u32 [#allocation2], 4
      %s14 = int_to_ptr.vmem [resolvable:$true] %s13
      %19 = dma.hbm_to_vmem [thread:$0]  %s0, 256, %s14, [#allocation3], 128, 128, 8
    $region5: #{tpu_custom_call.1} parent=1 // pred_fallthru
      _
    // Predicated region
    $region6: #{tpu_custom_call.1} parent=1 // pred_check
      _
    $region7: #{tpu_custom_call.1} parent=1 // pred_check_branch
      %21 = sbr.rel (0) target = $region9
    $region8: #{tpu_custom_call.1} parent=1 // pred_region
      %22 = dma.done [#allocation3], 256
    $region9: #{tpu_custom_call.1} parent=1 // pred_fallthru
      _
    %v23 = vld [vmem:[#allocation2] sm:$0xff]
    %v24 = vld [vmem:[#allocation2 + $0x8] sm:$0xff]
    %v25 = vmin.f32 %v23, %v24
    %26 = vmin.xlane.f32.xlu0 %v25
    %v27 = vpop.xlane.xlu0 %26
    %v28 = vrot.slane %v27, 4
    %v29 = vmin.f32 %v27, %v28
    %v30 = vrot.slane %v29, 2
    %v31 = vmin.f32 %v29, %v30
    %v32 = vrot.slane %v31, 1
    %v33 = vmin.f32 %v31, %v32
    %s34 = vtos %v33
    %v35 = vmax.f32 %v23, %v24
    %36 = vmax.xlane.f32.xlu0 %v35
    %v37 = vpop.xlane.xlu0 %36
    %v38 = vrot.slane %v37, 4
    %v39 = vmax.f32 %v37, %v38
    %v40 = vrot.slane %v39, 2
    %v41 = vmax.f32 %v39, %v40
    %v42 = vrot.slane %v41, 1
    %v43 = vmax.f32 %v41, %v42
    %s44 = vtos %v43
    %s45 = ssub.f32 %s44, %s34
    %v46 = vrcp.pop 15.0
    %s47 = vtos %v46
    %s48 = smul.f32 %s45, %s47
    %v49 = vstv %s34
    %v50 = vsub.f32 %v23, %v49
    %v51 = vsub.f32 %v24, %v49
    %s52 = sadd.f32 %s48, 1e-10
    %v53 = vstv %s52
    %v54 = vrcp.pop %v53
    %v55 = vmul.f32 %v50, %v54
    %v56 = vmul.f32 %v51, %v54
    %v57 = vround.ne.pseudo %v55
    %v58 = vround.ne.pseudo %v56
    %v59 = vstv %s48
    %v60 = vmul.f32 %v57, %v59
    %v61 = vmul.f32 %v58, %v59
    %v62 = vadd.f32 %v60, %v49
    %v63 = vadd.f32 %v61, %v49
    %64 = vst [vmem:[#allocation5] sm:$0xff] %v62
    %65 = vst [vmem:[#allocation5 + $0x8] sm:$0xff] %v63
    // Predicated region
    $region10: #{tpu_custom_call.1} parent=1 // pred_check
      _
    $region11: #{tpu_custom_call.1} parent=1 // pred_check_branch
      %67 = sbr.rel (0) target = $region13
    $region12: #{tpu_custom_call.1} parent=1 // pred_region
      %s69 = ssub.s32 256, 256
      %70 = vsyncadd [#allocation4], %s69
      %s71 = sshll.u32 [#allocation5], 4
      %s72 = int_to_ptr.vmem [resolvable:$true] %s71
      %77 = dma.vmem_to_hbm [thread:$0]  %s72, 256, %s1, [#allocation4], 128, 128, 8
    $region13: #{tpu_custom_call.1} parent=1 // pred_fallthru
      _
    // Predicated region
    $region14: #{tpu_custom_call.1} parent=1 // pred_check
      _
    $region15: #{tpu_custom_call.1} parent=1 // pred_check_branch
      %79 = sbr.rel (0) target = $region17
    $region16: #{tpu_custom_call.1} parent=1 // pred_region
      %80 = dma.done [#allocation4], 256
    $region17: #{tpu_custom_call.1} parent=1 // pred_fallthru
      _
    %81 = vsyncpa [#allocation3], 1
    %82 = vsyncpa [#allocation4], 1

</llo_original>
